<compile_context>
chip_gen: v6e
topology: v6e:2x2x1
jax: 0.10.0
libtpu: 0.0.40
codegen_flags: <defaults>
</compile_context>

<pallas_src>
import functools
import math

import jax
import jax.numpy as jnp
from jax.experimental import pallas as pl
from jax.experimental.pallas import tpu as pltpu

_HALF_LOG_2PI = 0.5 * math.log(2.0 * math.pi)
_LANES = 128
_MAX_ROW_TILE = 512  # rows of 128 lanes per grid step (6 in x 2 buf x 256 KiB ~ 3 MiB VMEM)


def _combined_loss_kernel(out1_ref, out2_ref, out3_ref,
                          rmin_ref, rave_ref, nrmsd_ref,
                          loss_ref,
                          acc1, acc2, acc3,
                          *, inv_n, pad_correction):
    step = pl.program_id(0)

    @pl.when(step == 0)
    def _init():
        acc1[...] = jnp.zeros_like(acc1)
        acc2[...] = jnp.zeros_like(acc2)
        acc3[...] = jnp.zeros_like(acc3)

    # MSE partials: accumulate squared errors element-wise (pure VPU work);
    # the cross-lane reduction is deferred to the finalize step.
    d1 = out1_ref[...] - rmin_ref[...]
    acc1[...] += d1 * d1
    d2 = out2_ref[...] - rave_ref[...]
    acc2[...] += d2 * d2

    # Poisson NLL (log_input=True, full=True): exp(x) - t*x + Stirling(t) for t > 1.
    x = out3_ref[...]
    t = nrmsd_ref[...]
    base = jnp.exp(x) - t * x
    use_stirling = t > 1.0
    t_safe = jnp.where(use_stirling, t, 1.0)      # avoid log(0); masked below
    # t*log(t) - t + 0.5*log(2*pi*t) == (t + 0.5)*log(t) - t + 0.5*log(2*pi)
    stirling = (t_safe + 0.5) * jnp.log(t_safe) - t_safe + _HALF_LOG_2PI
    acc3[...] += base + jnp.where(use_stirling, stirling, 0.0)

    @pl.when(step == pl.num_programs(0) - 1)
    def _finalize():
        loss_ref[0] = jnp.sum(acc1[...]) * inv_n
        loss_ref[1] = jnp.sum(acc2[...]) * inv_n
        # Each zero-padded tail element contributed exactly exp(0) - 0*0 = 1.0
        # to the Poisson sum; subtract that exact amount before normalizing.
        loss_ref[2] = (jnp.sum(acc3[...]) - pad_correction) * inv_n


def combined_loss(out1, out2, out3, rmsd_min, rmsd_ave, n_rmsd):
    """Pallas TPU implementation of CombinedLoss.forward. Returns 3 scalar losses."""
    assert out1.shape == out2.shape == out3.shape
    assert out1.shape == rmsd_min.shape == rmsd_ave.shape == n_rmsd.shape

    n = int(out1.size)

    # Lane-dense layout: flatten, pad to a whole number of (row_tile, 128) blocks.
    rows = -(-n // _LANES)
    rows = -(-rows // 8) * 8                       # sublane multiple of 8
    row_tile = min(_MAX_ROW_TILE, rows)
    rows_pad = -(-rows // row_tile) * row_tile
    pad_elems = rows_pad * _LANES - n
    n_steps = rows_pad // row_tile

    def _prep(a):
        flat = jnp.ravel(a).astype(jnp.float32)
        if pad_elems:
            flat = jnp.pad(flat, (0, pad_elems))
        return flat.reshape(rows_pad, _LANES)

    ins = [_prep(a) for a in (out1, out2, out3, rmsd_min, rmsd_ave, n_rmsd)]

    in_spec = pl.BlockSpec((row_tile, _LANES), lambda i: (i, 0))
    kernel = functools.partial(
        _combined_loss_kernel,
        inv_n=1.0 / n,
        pad_correction=float(pad_elems),
    )

    losses = pl.pallas_call(
        kernel,
        grid=(n_steps,),
        in_specs=[in_spec] * 6,
        out_specs=pl.BlockSpec(memory_space=pltpu.MemorySpace.SMEM),
        out_shape=jax.ShapeDtypeStruct((3,), jnp.float32),
        scratch_shapes=[pltpu.VMEM((row_tile, _LANES), jnp.float32)] * 3,
        compiler_params=pltpu.CompilerParams(
            dimension_semantics=("arbitrary",),
            vmem_limit_bytes=32 * 1024 * 1024,
        ),
    )(*ins)

    return losses[0], losses[1], losses[2]


if __name__ == "__main__":
    key = jax.random.PRNGKey(0)
    k1, k2, k3, k4, k5, k6 = jax.random.split(key, 6)

    # Small shapes consistent with (batch, n_tasks) prediction/target tensors.
    B, F = 8, 32
    out1 = jax.random.normal(k1, (B, F), dtype=jnp.float32)
    out2 = jax.random.normal(k2, (B, F), dtype=jnp.float32)
    out3 = jax.random.normal(k3, (B, F), dtype=jnp.float32)        # log-rates
    rmsd_min = jax.random.uniform(k4, (B, F), dtype=jnp.float32, minval=0.0, maxval=5.0)
    rmsd_ave = jax.random.uniform(k5, (B, F), dtype=jnp.float32, minval=0.0, maxval=5.0)
    n_rmsd = jax.random.randint(k6, (B, F), 0, 10).astype(jnp.float32)  # Poisson counts

    l_min, l_ave, l_n = combined_loss(out1, out2, out3, rmsd_min, rmsd_ave, n_rmsd)
    jax.block_until_ready((l_min, l_ave, l_n))

    # Pure-JAX reference (same math as PyTorch MSELoss / PoissonNLLLoss).
    ref_min = jnp.mean((out1 - rmsd_min) ** 2)
    ref_ave = jnp.mean((out2 - rmsd_ave) ** 2)
    base = jnp.exp(out3) - n_rmsd * out3
    mask = n_rmsd > 1.0
    t_safe = jnp.where(mask, n_rmsd, 1.0)
    stirl = t_safe * jnp.log(t_safe) - t_safe + 0.5 * jnp.log(2.0 * math.pi * t_safe)
    ref_n = jnp.mean(base + jnp.where(mask, stirl, 0.0))

    assert jnp.allclose(l_min, ref_min, rtol=1e-5, atol=1e-5)
    assert jnp.allclose(l_ave, ref_ave, rtol=1e-5, atol=1e-5)
    assert jnp.allclose(l_n, ref_n, rtol=1e-5, atol=1e-5)

    print("KERNEL_OK")
</pallas_src>

<mosaic_0001>
module attributes {stable_mosaic.version = 11 : i64} {
  func.func @_combined_loss_kernel(%arg0: i32, %arg1: memref<8x128xf32, #tpu.memory_space<vmem>>, %arg2: memref<8x128xf32, #tpu.memory_space<vmem>>, %arg3: memref<8x128xf32, #tpu.memory_space<vmem>>, %arg4: memref<8x128xf32, #tpu.memory_space<vmem>>, %arg5: memref<8x128xf32, #tpu.memory_space<vmem>>, %arg6: memref<8x128xf32, #tpu.memory_space<vmem>>, %arg7: memref<3xf32, #tpu.memory_space<smem>>, %arg8: memref<8x128xf32, #tpu.memory_space<vmem>>, %arg9: memref<8x128xf32, #tpu.memory_space<vmem>>, %arg10: memref<8x128xf32, #tpu.memory_space<vmem>>) attributes {dimension_semantics = [#tpu.dimension_semantics<arbitrary>], iteration_bounds = array<i64: 1>, scalar_prefetch = 0 : i64, scratch_operands = 3 : i64, tpu.core_type = #tpu.core_type<tc>, window_params = [{transform_indices = @transform_0, window_bounds = array<i64: 8, 128>}, {transform_indices = @transform_1, window_bounds = array<i64: 8, 128>}, {transform_indices = @transform_2, window_bounds = array<i64: 8, 128>}, {transform_indices = @transform_3, window_bounds = array<i64: 8, 128>}, {transform_indices = @transform_4, window_bounds = array<i64: 8, 128>}, {transform_indices = @transform_5, window_bounds = array<i64: 8, 128>}, {transform_indices = @transform_6, window_bounds = array<i64: 3>}]} {
    %c0_i32 = arith.constant 0 : i32
    %0 = arith.cmpi eq, %arg0, %c0_i32 : i32
    %1 = arith.extui %0 : i1 to i32
    %c0_i32_0 = arith.constant 0 : i32
    %2 = arith.cmpi ne, %1, %c0_i32_0 : i32
    scf.if %2 {
      %cst_30 = arith.constant 0.000000e+00 : f32
      %42 = vector.broadcast %cst_30 : f32 to vector<8x128xf32>
      %c0_31 = arith.constant 0 : index
      %c0_32 = arith.constant 0 : index
      %43 = vector.load %arg8[%c0_31, %c0_32] : memref<8x128xf32, #tpu.memory_space<vmem>>, vector<8x128xf32>
      tpu.vector_store %arg8[%c0_31, %c0_32], %42 {strides = array<i32>} : memref<8x128xf32, #tpu.memory_space<vmem>>, vector<8x128xf32>,
      %cst_33 = arith.constant 0.000000e+00 : f32
      %44 = vector.broadcast %cst_33 : f32 to vector<8x128xf32>
      %c0_34 = arith.constant 0 : index
      %c0_35 = arith.constant 0 : index
      %45 = vector.load %arg9[%c0_34, %c0_35] : memref<8x128xf32, #tpu.memory_space<vmem>>, vector<8x128xf32>
      tpu.vector_store %arg9[%c0_34, %c0_35], %44 {strides = array<i32>} : memref<8x128xf32, #tpu.memory_space<vmem>>, vector<8x128xf32>,
      %cst_36 = arith.constant 0.000000e+00 : f32
      %46 = vector.broadcast %cst_36 : f32 to vector<8x128xf32>
      %c0_37 = arith.constant 0 : index
      %c0_38 = arith.constant 0 : index
      %47 = vector.load %arg10[%c0_37, %c0_38] : memref<8x128xf32, #tpu.memory_space<vmem>>, vector<8x128xf32>
      tpu.vector_store %arg10[%c0_37, %c0_38], %46 {strides = array<i32>} : memref<8x128xf32, #tpu.memory_space<vmem>>, vector<8x128xf32>,
    } else {
    }
    %c0 = arith.constant 0 : index
    %c0_1 = arith.constant 0 : index
    %3 = vector.load %arg1[%c0, %c0_1] : memref<8x128xf32, #tpu.memory_space<vmem>>, vector<8x128xf32>
    %c0_2 = arith.constant 0 : index
    %c0_3 = arith.constant 0 : index
    %4 = vector.load %arg4[%c0_2, %c0_3] : memref<8x128xf32, #tpu.memory_space<vmem>>, vector<8x128xf32>
    %5 = arith.subf %3, %4 : vector<8x128xf32>
    %c0_4 = arith.constant 0 : index
    %c0_5 = arith.constant 0 : index
    %6 = vector.load %arg8[%c0_4, %c0_5] : memref<8x128xf32, #tpu.memory_space<vmem>>, vector<8x128xf32>
    %7 = arith.mulf %5, %5 : vector<8x128xf32>
    %8 = arith.addf %6, %7 : vector<8x128xf32>
    %c0_6 = arith.constant 0 : index
    %c0_7 = arith.constant 0 : index
    %9 = vector.load %arg8[%c0_6, %c0_7] : memref<8x128xf32, #tpu.memory_space<vmem>>, vector<8x128xf32>
    tpu.vector_store %arg8[%c0_6, %c0_7], %8 {strides = array<i32>} : memref<8x128xf32, #tpu.memory_space<vmem>>, vector<8x128xf32>,
    %c0_8 = arith.constant 0 : index
    %c0_9 = arith.constant 0 : index
    %10 = vector.load %arg2[%c0_8, %c0_9] : memref<8x128xf32, #tpu.memory_space<vmem>>, vector<8x128xf32>
    %c0_10 = arith.constant 0 : index
    %c0_11 = arith.constant 0 : index
    %11 = vector.load %arg5[%c0_10, %c0_11] : memref<8x128xf32, #tpu.memory_space<vmem>>, vector<8x128xf32>
    %12 = arith.subf %10, %11 : vector<8x128xf32>
    %c0_12 = arith.constant 0 : index
    %c0_13 = arith.constant 0 : index
    %13 = vector.load %arg9[%c0_12, %c0_13] : memref<8x128xf32, #tpu.memory_space<vmem>>, vector<8x128xf32>
    %14 = arith.mulf %12, %12 : vector<8x128xf32>
    %15 = arith.addf %13, %14 : vector<8x128xf32>
    %c0_14 = arith.constant 0 : index
    %c0_15 = arith.constant 0 : index
    %16 = vector.load %arg9[%c0_14, %c0_15] : memref<8x128xf32, #tpu.memory_space<vmem>>, vector<8x128xf32>
    tpu.vector_store %arg9[%c0_14, %c0_15], %15 {strides = array<i32>} : memref<8x128xf32, #tpu.memory_space<vmem>>, vector<8x128xf32>,
    %c0_16 = arith.constant 0 : index
    %c0_17 = arith.constant 0 : index
    %17 = vector.load %arg3[%c0_16, %c0_17] : memref<8x128xf32, #tpu.memory_space<vmem>>, vector<8x128xf32>
    %c0_18 = arith.constant 0 : index
    %c0_19 = arith.constant 0 : index
    %18 = vector.load %arg6[%c0_18, %c0_19] : memref<8x128xf32, #tpu.memory_space<vmem>>, vector<8x128xf32>
    %19 = math.exp %17 : vector<8x128xf32>
    %20 = arith.mulf %18, %17 : vector<8x128xf32>
    %21 = arith.subf %19, %20 : vector<8x128xf32>
    %cst = arith.constant 1.000000e+00 : f32
    %22 = vector.broadcast %cst : f32 to vector<8x128xf32>
    %23 = arith.cmpf ogt, %18, %22 : vector<8x128xf32>
    %cst_20 = arith.constant 1.000000e+00 : f32
    %24 = vector.broadcast %cst_20 : f32 to vector<8x128xf32>
    %25 = arith.select %23, %18, %24 : vector<8x128xi1>, vector<8x128xf32>
    %cst_21 = arith.constant 5.000000e-01 : f32
    %26 = vector.broadcast %cst_21 : f32 to vector<8x128xf32>
    %27 = arith.addf %25, %26 : vector<8x128xf32>
    %28 = math.log %25 : vector<8x128xf32>
    %29 = arith.mulf %27, %28 : vector<8x128xf32>
    %30 = arith.subf %29, %25 : vector<8x128xf32>
    %cst_22 = arith.constant 0.918938517 : f32
    %31 = vector.broadcast %cst_22 : f32 to vector<8x128xf32>
    %32 = arith.addf %30, %31 : vector<8x128xf32>
    %c0_23 = arith.constant 0 : index
    %c0_24 = arith.constant 0 : index
    %33 = vector.load %arg10[%c0_23, %c0_24] : memref<8x128xf32, #tpu.memory_space<vmem>>, vector<8x128xf32>
    %cst_25 = arith.constant 0.000000e+00 : f32
    %34 = vector.broadcast %cst_25 : f32 to vector<8x128xf32>
    %35 = arith.select %23, %32, %34 : vector<8x128xi1>, vector<8x128xf32>
    %36 = arith.addf %21, %35 : vector<8x128xf32>
    %37 = arith.addf %33, %36 : vector<8x128xf32>
    %c0_26 = arith.constant 0 : index
    %c0_27 = arith.constant 0 : index
    %38 = vector.load %arg10[%c0_26, %c0_27] : memref<8x128xf32, #tpu.memory_space<vmem>>, vector<8x128xf32>
    tpu.vector_store %arg10[%c0_26, %c0_27], %37 {strides = array<i32>} : memref<8x128xf32, #tpu.memory_space<vmem>>, vector<8x128xf32>,
    %c0_i32_28 = arith.constant 0 : i32
    %39 = arith.cmpi eq, %arg0, %c0_i32_28 : i32
    %40 = arith.extui %39 : i1 to i32
    %c0_i32_29 = arith.constant 0 : i32
    %41 = arith.cmpi ne, %40, %c0_i32_29 : i32
    scf.if %41 {
      %c0_30 = arith.constant 0 : index
      %c0_31 = arith.constant 0 : index
      %42 = vector.load %arg8[%c0_30, %c0_31] : memref<8x128xf32, #tpu.memory_space<vmem>>, vector<8x128xf32>
      %43 = vector.shape_cast %42 : vector<8x128xf32> to vector<1x8x128xf32>
      %cst_32 = arith.constant dense<0.000000e+00> : vector<1xf32>
      %44 = vector.multi_reduction <add>, %43, %cst_32 [1, 2] : vector<1x8x128xf32> to vector<1xf32>
      %45 = vector.shape_cast %44 : vector<1xf32> to vector<1x1x1xf32>
      %46 = vector.extract %45[0, 0, 0] : f32 from vector<1x1x1xf32>
      %cst_33 = arith.constant 3.906250e-03 : f32
      %47 = arith.mulf %46, %cst_33 : f32
      %c0_34 = arith.constant 0 : index
      %48 = memref.load %arg7[%c0_34] : memref<3xf32, #tpu.memory_space<smem>>
      memref.store %47, %arg7[%c0_34] : memref<3xf32, #tpu.memory_space<smem>>
      %c0_35 = arith.constant 0 : index
      %c0_36 = arith.constant 0 : index
      %49 = vector.load %arg9[%c0_35, %c0_36] : memref<8x128xf32, #tpu.memory_space<vmem>>, vector<8x128xf32>
      %50 = vector.shape_cast %49 : vector<8x128xf32> to vector<1x8x128xf32>
      %cst_37 = arith.constant dense<0.000000e+00> : vector<1xf32>
      %51 = vector.multi_reduction <add>, %50, %cst_37 [1, 2] : vector<1x8x128xf32> to vector<1xf32>
      %52 = vector.shape_cast %51 : vector<1xf32> to vector<1x1x1xf32>
      %53 = vector.extract %52[0, 0, 0] : f32 from vector<1x1x1xf32>
      %cst_38 = arith.constant 3.906250e-03 : f32
      %54 = arith.mulf %53, %cst_38 : f32
      %c1 = arith.constant 1 : index
      %55 = memref.load %arg7[%c1] : memref<3xf32, #tpu.memory_space<smem>>
      memref.store %54, %arg7[%c1] : memref<3xf32, #tpu.memory_space<smem>>
      %c0_39 = arith.constant 0 : index
      %c0_40 = arith.constant 0 : index
      %56 = vector.load %arg10[%c0_39, %c0_40] : memref<8x128xf32, #tpu.memory_space<vmem>>, vector<8x128xf32>
      %57 = vector.shape_cast %56 : vector<8x128xf32> to vector<1x8x128xf32>
      %cst_41 = arith.constant dense<0.000000e+00> : vector<1xf32>
      %58 = vector.multi_reduction <add>, %57, %cst_41 [1, 2] : vector<1x8x128xf32> to vector<1xf32>
      %59 = vector.shape_cast %58 : vector<1xf32> to vector<1x1x1xf32>
      %60 = vector.extract %59[0, 0, 0] : f32 from vector<1x1x1xf32>
      %cst_42 = arith.constant 7.680000e+02 : f32
      %61 = arith.subf %60, %cst_42 : f32
      %cst_43 = arith.constant 3.906250e-03 : f32
      %62 = arith.mulf %61, %cst_43 : f32
      %c2 = arith.constant 2 : index
      %63 = memref.load %arg7[%c2] : memref<3xf32, #tpu.memory_space<smem>>
      memref.store %62, %arg7[%c2] : memref<3xf32, #tpu.memory_space<smem>>
    } else {
    }
    return
  }
  func.func @transform_0(%arg0: i32) -> (i32, i32) {
    %c0_i32 = arith.constant 0 : i32
    %c0_i32_0 = arith.constant 0 : i32
    return %arg0, %c0_i32 : i32, i32
  }
  func.func @transform_1(%arg0: i32) -> (i32, i32) {
    %c0_i32 = arith.constant 0 : i32
    %c0_i32_0 = arith.constant 0 : i32
    return %arg0, %c0_i32 : i32, i32
  }
  func.func @transform_2(%arg0: i32) -> (i32, i32) {
    %c0_i32 = arith.constant 0 : i32
    %c0_i32_0 = arith.constant 0 : i32
    return %arg0, %c0_i32 : i32, i32
  }
  func.func @transform_3(%arg0: i32) -> (i32, i32) {
    %c0_i32 = arith.constant 0 : i32
    %c0_i32_0 = arith.constant 0 : i32
    return %arg0, %c0_i32 : i32, i32
  }
  func.func @transform_4(%arg0: i32) -> (i32, i32) {
    %c0_i32 = arith.constant 0 : i32
    %c0_i32_0 = arith.constant 0 : i32
    return %arg0, %c0_i32 : i32, i32
  }
  func.func @transform_5(%arg0: i32) -> (i32, i32) {
    %c0_i32 = arith.constant 0 : i32
    %c0_i32_0 = arith.constant 0 : i32
    return %arg0, %c0_i32 : i32, i32
  }
  func.func @transform_6(%arg0: i32) -> i32 {
    %c0_i32 = arith.constant 0 : i32
    %c0_i32_0 = arith.constant 0 : i32
    return %c0_i32 : i32
  }
}

</mosaic_0001>

<llo_original>
// kernel: tpu_custom_call.1
$region0: #{tpu_custom_call.1}
  #allocation0 [shape = 'u32[]', space=smem, size = 0x4, offset = 0x4, fixed_abs, tag = 'smem constant byte address 0x4 - core index']
  #allocation1 [shape = 'u32[144,128]{1,0:T(1,128)}', space=vmem, size = 0x12000, scoped, tag = 'internal scratch']
  #allocation2 [shape = 'f32[8,128]{1,0:T(8,128)}', space=vmem, size = 0x1000, scoped, tag = 'scratch operand']
  #allocation3 [shape = 'f32[8,128]{1,0:T(8,128)}', space=vmem, size = 0x1000, scoped, tag = 'scratch operand']
  #allocation4 [shape = 'f32[8,128]{1,0:T(8,128)}', space=vmem, size = 0x1000, scoped, tag = 'scratch operand']
  %s0 = inlined_call_operand.hbm [shape: f32[8,128], index: 0, kind: input, shape index: {}]
  %s1 = inlined_call_operand.hbm [shape: f32[8,128], index: 1, kind: input, shape index: {}]
  %s2 = inlined_call_operand.hbm [shape: f32[8,128], index: 2, kind: input, shape index: {}]
  %s3 = inlined_call_operand.hbm [shape: f32[8,128], index: 3, kind: input, shape index: {}]
  %s4 = inlined_call_operand.hbm [shape: f32[8,128], index: 4, kind: input, shape index: {}]
  %s5 = inlined_call_operand.vmem [shape: f32[8,128], index: 5, kind: input, shape index: {}]
  %s6 = inlined_call_operand.hbm [shape: f32[3], index: 6, kind: output, shape index: {}]
  %s7 = sld [smem:[#allocation0]]
  $region62: #{tpu_custom_call.1} parent=0
    _
  %s9 = ssub.s32 1, %s7
  %s10 = scalar_select 0, %s9, %s7
  $region1: #{tpu_custom_call.1} parent=0
    #allocation5 [shape = 'u8[4096]{0}', space=vmem, size = 0x1000, scoped, tag = 'input window, operand 0, single buffered']
    #allocation6 [shape = 's32[1]{0}', space=sflag, size = 0x4, scoped, tag = 'scoped memory for tpu_custom_call.1']
    #allocation7 [shape = 's32[1]{0}', space=sflag, size = 0x4, scoped, tag = 'scoped memory for tpu_custom_call.1']
    #allocation8 [shape = 'u8[4096]{0}', space=vmem, size = 0x1000, scoped, tag = 'input window, operand 1, single buffered']
    #allocation9 [shape = 's32[1]{0}', space=sflag, size = 0x4, scoped, tag = 'scoped memory for tpu_custom_call.1']
    #allocation10 [shape = 'u8[4096]{0}', space=vmem, size = 0x1000, scoped, tag = 'input window, operand 2, single buffered']
    #allocation11 [shape = 'u8[4096]{0}', space=vmem, size = 0x1000, scoped, tag = 'input window, operand 3, single buffered']
    #allocation12 [shape = 's32[1]{0}', space=sflag, size = 0x4, scoped, tag = 'scoped memory for tpu_custom_call.1']
    #allocation13 [shape = 'u8[4096]{0}', space=vmem, size = 0x1000, scoped, tag = 'input window, operand 4, single buffered']
    #allocation14 [shape = 'u8[512]{0}', space=smem, size = 0x200, scoped, tag = 'output window, operand 0, single buffered']
    %11 = vsyncpa [#allocation6], 0
    %12 = vsyncpa [#allocation9], 0
    %13 = vsyncpa [#allocation12], 0
    %14 = vsyncpa [#allocation7], 0
    // Predicated region
    $region2: #{tpu_custom_call.1} parent=1 // pred_check
      _
    $region3: #{tpu_custom_call.1} parent=1 // pred_check_branch
      %16 = sbr.rel (0) target = $region5
    $region4: #{tpu_custom_call.1} parent=1 // pred_region
      %s18 = ssub.s32 128, 128
      %19 = vsyncadd [#allocation6], %s18
      %s21 = sshll.u32 [#allocation5], 4
      %s22 = int_to_ptr.vmem [resolvable:$true] %s21
      %24 = dma.hbm_to_vmem [thread:$0]  %s0, 128, %s22, [#allocation6]
    $region5: #{tpu_custom_call.1} parent=1 // pred_fallthru
      _
    // Predicated region
    $region6: #{tpu_custom_call.1} parent=1 // pred_check
      _
    $region7: #{tpu_custom_call.1} parent=1 // pred_check_branch
      %26 = sbr.rel (0) target = $region9
    $region8: #{tpu_custom_call.1} parent=1 // pred_region
      %s28 = ssub.s32 128, 128
      %29 = vsyncadd [#allocation9], %s28
      %s31 = sshll.u32 [#allocation8], 4
      %s32 = int_to_ptr.vmem [resolvable:$true] %s31
      %34 = dma.hbm_to_vmem [thread:$0]  %s1, 128, %s32, [#allocation9]
    $region9: #{tpu_custom_call.1} parent=1 // pred_fallthru
      _
    // Predicated region
    $region10: #{tpu_custom_call.1} parent=1 // pred_check
      _
    $region11: #{tpu_custom_call.1} parent=1 // pred_check_branch
      %36 = sbr.rel (0) target = $region13
    $region12: #{tpu_custom_call.1} parent=1 // pred_region
      %s38 = ssub.s32 128, 128
      %39 = vsyncadd [#allocation9], %s38
      %s41 = sshll.u32 [#allocation10], 4
      %s42 = int_to_ptr.vmem [resolvable:$true] %s41
      %44 = dma.hbm_to_vmem [thread:$0]  %s2, 128, %s42, [#allocation9]
    $region13: #{tpu_custom_call.1} parent=1 // pred_fallthru
      _
    // Predicated region
    $region14: #{tpu_custom_call.1} parent=1 // pred_check
      _
    $region15: #{tpu_custom_call.1} parent=1 // pred_check_branch
      %46 = sbr.rel (0) target = $region17
    $region16: #{tpu_custom_call.1} parent=1 // pred_region
      %s48 = ssub.s32 128, 128
      %49 = vsyncadd [#allocation12], %s48
      %s51 = sshll.u32 [#allocation11], 4
      %s52 = int_to_ptr.vmem [resolvable:$true] %s51
      %54 = dma.hbm_to_vmem [thread:$0]  %s3, 128, %s52, [#allocation12]
    $region17: #{tpu_custom_call.1} parent=1 // pred_fallthru
      _
    // Predicated region
    $region18: #{tpu_custom_call.1} parent=1 // pred_check
      _
    $region19: #{tpu_custom_call.1} parent=1 // pred_check_branch
      %56 = sbr.rel (0) target = $region21
    $region20: #{tpu_custom_call.1} parent=1 // pred_region
      %s58 = ssub.s32 128, 128
      %59 = vsyncadd [#allocation12], %s58
      %s61 = sshll.u32 [#allocation13], 4
      %s62 = int_to_ptr.vmem [resolvable:$true] %s61
      %64 = dma.hbm_to_vmem [thread:$0]  %s4, 128, %s62, [#allocation12]
    $region21: #{tpu_custom_call.1} parent=1 // pred_fallthru
      _
    // Predicated region
    $region22: #{tpu_custom_call.1} parent=1 // pred_check
      _
    $region23: #{tpu_custom_call.1} parent=1 // pred_check_branch
      %66 = sbr.rel (0) target = $region25
    $region24: #{tpu_custom_call.1} parent=1 // pred_region
      _
    $region25: #{tpu_custom_call.1} parent=1 // pred_fallthru
      _
    // Predicated region
    $region26: #{tpu_custom_call.1} parent=1 // pred_check
      _
    $region27: #{tpu_custom_call.1} parent=1 // pred_check_branch
      %68 = sbr.rel (0) target = $region29
    $region28: #{tpu_custom_call.1} parent=1 // pred_region
      %69 = dma.done [#allocation6], 128
    $region29: #{tpu_custom_call.1} parent=1 // pred_fallthru
      _
    // Predicated region
    $region30: #{tpu_custom_call.1} parent=1 // pred_check
      _
    $region31: #{tpu_custom_call.1} parent=1 // pred_check_branch
      %71 = sbr.rel (0) target = $region33
    $region32: #{tpu_custom_call.1} parent=1 // pred_region
      %72 = dma.done [#allocation9], 128
    $region33: #{tpu_custom_call.1} parent=1 // pred_fallthru
      _
    // Predicated region
    $region34: #{tpu_custom_call.1} parent=1 // pred_check
      _
    $region35: #{tpu_custom_call.1} parent=1 // pred_check_branch
      %74 = sbr.rel (0) target = $region37
    $region36: #{tpu_custom_call.1} parent=1 // pred_region
      %75 = dma.done [#allocation9], 128
    $region37: #{tpu_custom_call.1} parent=1 // pred_fallthru
      _
    // Predicated region
    $region38: #{tpu_custom_call.1} parent=1 // pred_check
      _
    $region39: #{tpu_custom_call.1} parent=1 // pred_check_branch
      %77 = sbr.rel (0) target = $region41
    $region40: #{tpu_custom_call.1} parent=1 // pred_region
      %78 = dma.done [#allocation12], 128
    $region41: #{tpu_custom_call.1} parent=1 // pred_fallthru
      _
    // Predicated region
    $region42: #{tpu_custom_call.1} parent=1 // pred_check
      _
    $region43: #{tpu_custom_call.1} parent=1 // pred_check_branch
      %80 = sbr.rel (0) target = $region45
    $region44: #{tpu_custom_call.1} parent=1 // pred_region
      %81 = dma.done [#allocation12], 128
    $region45: #{tpu_custom_call.1} parent=1 // pred_fallthru
      _
    %p82 = scmp.eq.s32.totalorder 0, 0
    // Predicated region
    $region46: #{tpu_custom_call.1} parent=1 // pred_check
      %p83 = pneg %p82
    $region47: #{tpu_custom_call.1} parent=1 // pred_check_branch
      %85 = sbr.rel (%p83) target = $region49
    $region48: #{tpu_custom_call.1} parent=1 // pred_region
      %86 = vst [vmem:[#allocation2] sm:$0xff] 0.0
      %87 = vst [vmem:[#allocation3] sm:$0xff] 0.0
      %88 = vst [vmem:[#allocation4] sm:$0xff] 0.0
    $region49: #{tpu_custom_call.1} parent=1 // pred_fallthru
      _
    %v89 = vld [vmem:[#allocation5] sm:$0xff]
    %v90 = vld [vmem:[#allocation11] sm:$0xff]
    %v91 = vsub.f32 %v89, %v90
    %v92 = vld [vmem:[#allocation2] sm:$0xff]
    %v93 = vmul.f32 %v91, %v91
    %v94 = vadd.f32 %v92, %v93
    %95 = vst [vmem:[#allocation2] sm:$0xff] %v94
    %v96 = vld [vmem:[#allocation8] sm:$0xff]
    %v97 = vld [vmem:[#allocation13] sm:$0xff]
    %v98 = vsub.f32 %v96, %v97
    %v99 = vld [vmem:[#allocation3] sm:$0xff]
    %v100 = vmul.f32 %v98, %v98
    %v101 = vadd.f32 %v99, %v100
    %102 = vst [vmem:[#allocation3] sm:$0xff] %v101
    %v103 = vld [vmem:[#allocation10] sm:$0xff]
    %v104 = vld [vmem:[%s5] sm:$0xff]
    %v105 = vmul.f32 %v103, 1.442695
    %v106 = vpow.pop %v105
    %v107 = vmul.f32 %v104, %v103
    %v108 = vsub.f32 %v106, %v107
    %vm109 = vcmp.gt.f32.partialorder %v104, 1.0
    %v110 = vsel %vm109, %v104, 1.0
    %v111 = vadd.f32 %v110, 0.5
    %v112 = vlog2.pop %v110
    %v113 = vmul.f32 %v112, 0.6931472
    %v114 = vmul.f32 %v111, %v113
    %v115 = vsub.f32 %v114, %v110
    %v116 = vadd.f32 %v115, 0.9189385
    %v117 = vld [vmem:[#allocation4] sm:$0xff]
    %v118 = vsel %vm109, %v116, 0.0
    %v119 = vadd.f32 %v108, %v118
    %v120 = vadd.f32 %v117, %v119
    %121 = vst [vmem:[#allocation4] sm:$0xff] %v120
    // Predicated region
    $region50: #{tpu_custom_call.1} parent=1 // pred_check
      %p122 = pneg %p82
    $region51: #{tpu_custom_call.1} parent=1 // pred_check_branch
      %124 = sbr.rel (%p122) target = $region53
    $region52: #{tpu_custom_call.1} parent=1 // pred_region
      %v125 = vld [vmem:[#allocation2] sm:$0xff]
      %126 = vadd.xlane.f32.xlu0 %v125
      %v127 = vpop.xlane.xlu0 %126
      %v128 = vrot.slane %v127, 4
      %v129 = vadd.f32 %v127, %v128
      %v130 = vrot.slane %v129, 2
      %v131 = vadd.f32 %v129, %v130
      %v132 = vrot.slane %v131, 1
      %v133 = vadd.f32 %v131, %v132
      %s134 = vtos %v133
      %s135 = smul.f32 %s134, 0.00390625
      %s136 = scalar_lea.smem [#allocation14], 0
      %137 = sst [smem:[%s136]] %s135
      %v138 = vld [vmem:[#allocation3] sm:$0xff]
      %139 = vadd.xlane.f32.xlu0 %v138
      %v140 = vpop.xlane.xlu0 %139
      %v141 = vrot.slane %v140, 4
      %v142 = vadd.f32 %v140, %v141
      %v143 = vrot.slane %v142, 2
      %v144 = vadd.f32 %v142, %v143
      %v145 = vrot.slane %v144, 1
      %v146 = vadd.f32 %v144, %v145
      %s147 = vtos %v146
      %s148 = smul.f32 %s147, 0.00390625
      %s149 = scalar_lea.smem [#allocation14], 1
      %150 = sst [smem:[%s149]] %s148
      %v151 = vld [vmem:[#allocation4] sm:$0xff]
      %152 = vadd.xlane.f32.xlu0 %v151
      %v153 = vpop.xlane.xlu0 %152
      %v154 = vrot.slane %v153, 4
      %v155 = vadd.f32 %v153, %v154
      %v156 = vrot.slane %v155, 2
      %v157 = vadd.f32 %v155, %v156
      %v158 = vrot.slane %v157, 1
      %v159 = vadd.f32 %v157, %v158
      %s160 = vtos %v159
      %s161 = ssub.f32 %s160, 768.0
      %s162 = smul.f32 %s161, 0.00390625
      %s163 = scalar_lea.smem [#allocation14], 2
      %164 = sst [smem:[%s163]] %s162
    $region53: #{tpu_custom_call.1} parent=1 // pred_fallthru
      _
    // Predicated region
    $region54: #{tpu_custom_call.1} parent=1 // pred_check
      _
    $region55: #{tpu_custom_call.1} parent=1 // pred_check_branch
      %166 = sbr.rel (0) target = $region57
    $region56: #{tpu_custom_call.1} parent=1 // pred_region
      %s168 = ssub.s32 16, 16
      %169 = vsyncadd [#allocation7], %s168
      %172 = dma.smem_to_hbm [#allocation14], 16, %s6, [#allocation7]
    $region57: #{tpu_custom_call.1} parent=1 // pred_fallthru
      _
    // Predicated region
    $region58: #{tpu_custom_call.1} parent=1 // pred_check
      _
    $region59: #{tpu_custom_call.1} parent=1 // pred_check_branch
      %174 = sbr.rel (0) target = $region61
    $region60: #{tpu_custom_call.1} parent=1 // pred_region
      %175 = dma.done [#allocation7], 16
    $region61: #{tpu_custom_call.1} parent=1 // pred_fallthru
      _
    %176 = sfence
    %177 = vsyncpa [#allocation6], 1
    %178 = vsyncpa [#allocation9], 1
    %179 = vsyncpa [#allocation12], 1
    %180 = vsyncpa [#allocation7], 1

</llo_original>
